<compile_context>
chip_gen: v7x
topology: tpu7x:2x2x1
jax: 0.10.0
libtpu: 0.0.40
codegen_flags: <defaults>
</compile_context>

<pallas_src>
import jax
import jax.numpy as jnp
from jax.experimental import pallas as pl
from jax.experimental.pallas import tpu as pltpu


def _round_up(x, m):
    return (x + m - 1) // m * m


def lstm_cell_kernel(x_ref, hx_ref, cx_ref, w_ih_ref, w_hh_ref, b_ref,
                     nhx_ref, ncx_ref):
    """One (TM, .) row-tile of the fused LSTMCell forward."""
    Hp = cx_ref.shape[-1]

    # Two MXU pushes, f32 accumulation; bias pre-summed (b_ih + b_hh) in f32.
    gates = (jnp.dot(x_ref[...], w_ih_ref[...],
                     preferred_element_type=jnp.float32)
             + jnp.dot(hx_ref[...], w_hh_ref[...],
                       preferred_element_type=jnp.float32)
             + b_ref[...])

    # Lane-aligned per-gate slices (Hp is a multiple of 128).
    i_raw = gates[:, 0 * Hp:1 * Hp]
    f_raw = gates[:, 1 * Hp:2 * Hp]
    c_gate = gates[:, 2 * Hp:3 * Hp]
    o_raw = gates[:, 3 * Hp:4 * Hp]

    def l1_sigmoid(g):
        # torch.nn.functional.normalize(p=1, dim=2, eps=1e-12) -> sigmoid.
        # Padded lanes are exactly zero (zero weight & bias columns) so they
        # contribute nothing to the L1 norm.
        n = jnp.sum(jnp.abs(g), axis=-1, keepdims=True)
        inv = pl.reciprocal(jnp.maximum(n, 1e-12), approx=False)
        return jax.nn.sigmoid(g * inv)

    i_gate = l1_sigmoid(i_raw)
    f_gate = l1_sigmoid(f_raw)
    o_gate = l1_sigmoid(o_raw)
    # NOTE: c_gate is used raw (no tanh), exactly as in the reference module.

    cx = cx_ref[...].astype(jnp.float32)
    ncx = f_gate * cx + i_gate * c_gate
    nhx = o_gate * jnp.maximum(ncx, 0.0)     # ReLU activation on ncx

    ncx_ref[...] = ncx.astype(ncx_ref.dtype)
    nhx_ref[...] = nhx.astype(nhx_ref.dtype)


def prepare_lstm_params(w_ih, b_ih, w_hh, b_hh, *, compute_dtype=jnp.float32):
    """One-time weight prep (hoisted out of the per-call path).

    w_ih: [4H, Din], w_hh: [4H, H], biases: [4H].
    Returns:
      w_ih_p: [Din, 4*Hp]   (transposed, per-gate lane-padded, compute_dtype)
      w_hh_p: [H,   4*Hp]
      b_p:    [1,   4*Hp]   (b_ih + b_hh, f32)
    Padded columns are ZERO so they never perturb the L1 norms.
    """
    four_h, _ = w_ih.shape
    H = four_h // 4
    Hp = _round_up(H, 128)

    def pad_gates_t(w):                       # (4H, K) -> (K, 4*Hp)
        K = w.shape[1]
        w_t = w.T                             # (K, 4H)
        if Hp != H:
            w_t = jnp.pad(w_t.reshape(K, 4, H),
                          ((0, 0), (0, 0), (0, Hp - H))).reshape(K, 4 * Hp)
        return w_t.astype(compute_dtype)

    w_ih_p = pad_gates_t(w_ih)                # (Din, 4*Hp)
    w_hh_p = pad_gates_t(w_hh)                # (H,   4*Hp)

    b = (b_ih + b_hh).astype(jnp.float32).reshape(4, H)
    if Hp != H:
        b = jnp.pad(b, ((0, 0), (0, Hp - H)))
    b_p = b.reshape(1, 4 * Hp)
    return w_ih_p, w_hh_p, b_p


def lstm_cell(x, hx, cx, w_ih_p, w_hh_p, b_p, *, tile_m=512):
    """x: [B,T,Din]; hx,cx: [B,T,H]; prepared params from prepare_lstm_params."""
    B, T, Din = x.shape
    H = hx.shape[-1]
    Hp = b_p.shape[-1] // 4
    M = B * T
    out_dtype = cx.dtype
    compute_dtype = w_ih_p.dtype

    x2 = x.reshape(M, Din).astype(compute_dtype)
    hx2 = hx.reshape(M, H).astype(compute_dtype)
    cx2 = cx.reshape(M, H)
    if Hp != H:                               # only pad when lanes not aligned
        cx2 = jnp.pad(cx2, ((0, 0), (0, Hp - H)))

    # ---- row tiling: big tiles for pipelining, but >= 2 tiles for v7x's 2 TCs
    if M >= 2 * tile_m:
        TM = tile_m
    else:
        TM = max(8, _round_up((M + 1) // 2, 8))
    Mp = _round_up(M, TM)
    if Mp != M:                               # only pad when rows not aligned
        pad = ((0, Mp - M), (0, 0))
        x2 = jnp.pad(x2, pad)
        hx2 = jnp.pad(hx2, pad)
        cx2 = jnp.pad(cx2, pad)

    grid = (Mp // TM,)

    # VMEM budget: double-buffered activation/output tiles + resident weights,
    # with 2x headroom, capped at v7x's 64 MiB per-TC VMEM.
    isz_c = jnp.dtype(compute_dtype).itemsize
    isz_o = jnp.dtype(out_dtype).itemsize
    isz_cx = jnp.dtype(cx2.dtype).itemsize
    est = (2 * TM * (Din * isz_c + H * isz_c + Hp * isz_cx)     # x, hx, cx
           + 2 * 2 * TM * Hp * isz_o                            # nhx, ncx
           + 2 * ((Din + H) * 4 * Hp * isz_c + 4 * Hp * 4))     # weights + bias
    vmem_limit = int(min(max(2 * est, 32 * 1024 * 1024), 64 * 1024 * 1024))

    nhx_p, ncx_p = pl.pallas_call(
        lstm_cell_kernel,
        out_shape=(jax.ShapeDtypeStruct((Mp, Hp), out_dtype),
                   jax.ShapeDtypeStruct((Mp, Hp), out_dtype)),
        grid=grid,
        in_specs=[
            pl.BlockSpec((TM, Din), lambda i: (i, 0)),       # x row tile
            pl.BlockSpec((TM, H), lambda i: (i, 0)),         # hx row tile
            pl.BlockSpec((TM, Hp), lambda i: (i, 0)),        # cx row tile
            pl.BlockSpec((Din, 4 * Hp), lambda i: (0, 0)),   # W_ih^T (resident)
            pl.BlockSpec((H, 4 * Hp), lambda i: (0, 0)),     # W_hh^T (resident)
            pl.BlockSpec((1, 4 * Hp), lambda i: (0, 0)),     # fused bias
        ],
        out_specs=(pl.BlockSpec((TM, Hp), lambda i: (i, 0)),
                   pl.BlockSpec((TM, Hp), lambda i: (i, 0))),
        compiler_params=pltpu.CompilerParams(
            dimension_semantics=("parallel",),   # independent row tiles
            vmem_limit_bytes=vmem_limit),
    )(x2, hx2, cx2, w_ih_p, w_hh_p, b_p)

    if Mp != M or Hp != H:
        nhx = nhx_p[:M, :H].reshape(B, T, H)
        ncx = ncx_p[:M, :H].reshape(B, T, H)
    else:
        nhx = nhx_p.reshape(B, T, H)
        ncx = ncx_p.reshape(B, T, H)
    return nhx, ncx


def _reference(x, hx, cx, w_ih, b_ih, w_hh, b_hh):
    """Pure-JAX reference mirroring the PyTorch forward."""
    gates = x @ w_ih.T + b_ih + hx @ w_hh.T + b_hh
    H = hx.shape[-1]
    i_g, f_g, c_g, o_g = (gates[..., 0:H], gates[..., H:2 * H],
                          gates[..., 2 * H:3 * H], gates[..., 3 * H:4 * H])

    def l1n(g):
        return g / jnp.maximum(jnp.sum(jnp.abs(g), axis=-1, keepdims=True),
                               1e-12)

    i_g = jax.nn.sigmoid(l1n(i_g))
    f_g = jax.nn.sigmoid(l1n(f_g))
    o_g = jax.nn.sigmoid(l1n(o_g))
    ncx = f_g * cx + i_g * c_g
    nhx = o_g * jnp.maximum(ncx, 0.0)
    return nhx, ncx


if __name__ == "__main__":
    B, T = 2, 8
    input_size, hidden_size = 16, 32
    dtype = jnp.float32

    key = jax.random.PRNGKey(0)
    kx, kh, kc, k1, k2, k3, k4 = jax.random.split(key, 7)

    x = jax.random.normal(kx, (B, T, input_size), dtype)
    hx = jax.random.normal(kh, (B, T, hidden_size), dtype)
    cx = jax.random.normal(kc, (B, T, hidden_size), dtype)

    # Deterministic parameter init (PyTorch Linear-style uniform bounds).
    bnd_ih = 1.0 / jnp.sqrt(jnp.array(input_size, dtype))
    bnd_hh = 1.0 / jnp.sqrt(jnp.array(hidden_size, dtype))
    w_ih = jax.random.uniform(k1, (4 * hidden_size, input_size), dtype,
                              -bnd_ih, bnd_ih)
    b_ih = jax.random.uniform(k2, (4 * hidden_size,), dtype, -bnd_ih, bnd_ih)
    w_hh = jax.random.uniform(k3, (4 * hidden_size, hidden_size), dtype,
                              -bnd_hh, bnd_hh)
    b_hh = jax.random.uniform(k4, (4 * hidden_size,), dtype, -bnd_hh, bnd_hh)

    ref_nhx, ref_ncx = _reference(x, hx, cx, w_ih, b_ih, w_hh, b_hh)

    lstm_jit = jax.jit(lstm_cell)

    # --- f32 path: exact-ish (1e-5) match with the reference -----------------
    w_ih_f32, w_hh_f32, b_f32 = prepare_lstm_params(
        w_ih, b_ih, w_hh, b_hh, compute_dtype=jnp.float32)   # one-time prep
    nhx, ncx = lstm_jit(x, hx, cx, w_ih_f32, w_hh_f32, b_f32)
    jax.block_until_ready((nhx, ncx))
    assert jnp.allclose(nhx, ref_nhx, atol=1e-5, rtol=1e-5)
    assert jnp.allclose(ncx, ref_ncx, atol=1e-5, rtol=1e-5)

    # --- bf16 matmul-operand path: 4x MXU rate, half the DMA bytes -----------
    w_ih_b, w_hh_b, b_b = prepare_lstm_params(
        w_ih, b_ih, w_hh, b_hh, compute_dtype=jnp.bfloat16)  # one-time prep
    nhx_b, ncx_b = lstm_jit(x, hx, cx, w_ih_b, w_hh_b, b_b)
    jax.block_until_ready((nhx_b, ncx_b))
    assert jnp.allclose(nhx_b, ref_nhx, atol=5e-2, rtol=5e-2)
    assert jnp.allclose(ncx_b, ref_ncx, atol=5e-2, rtol=5e-2)

    print("KERNEL_OK")
</pallas_src>

<mosaic_0001>
module attributes {stable_mosaic.version = 11 : i64} {
  func.func @lstm_cell_kernel(%arg0: i32, %arg1: memref<8x16xf32, #tpu.memory_space<vmem>>, %arg2: memref<8x32xf32, #tpu.memory_space<vmem>>, %arg3: memref<8x128xf32, #tpu.memory_space<vmem>>, %arg4: memref<16x512xf32, #tpu.memory_space<vmem>>, %arg5: memref<32x512xf32, #tpu.memory_space<vmem>>, %arg6: memref<1x512xf32, #tpu.memory_space<vmem>>, %arg7: memref<8x128xf32, #tpu.memory_space<vmem>>, %arg8: memref<8x128xf32, #tpu.memory_space<vmem>>) attributes {dimension_semantics = [#tpu.dimension_semantics<parallel>], iteration_bounds = array<i64: 2>, scalar_prefetch = 0 : i64, scratch_operands = 0 : i64, tpu.core_type = #tpu.core_type<tc>, window_params = [{transform_indices = @transform_0, window_bounds = array<i64: 8, 16>}, {transform_indices = @transform_1, window_bounds = array<i64: 8, 32>}, {transform_indices = @transform_2, window_bounds = array<i64: 8, 128>}, {pipeline_mode = #tpu.pipeline_mode<synchronous>, transform_indices = @transform_3, window_bounds = array<i64: 16, 512>}, {pipeline_mode = #tpu.pipeline_mode<synchronous>, transform_indices = @transform_4, window_bounds = array<i64: 32, 512>}, {pipeline_mode = #tpu.pipeline_mode<synchronous>, transform_indices = @transform_5, window_bounds = array<i64: 1, 512>}, {transform_indices = @transform_6, window_bounds = array<i64: 8, 128>}, {transform_indices = @transform_7, window_bounds = array<i64: 8, 128>}]} {
    %c0 = arith.constant 0 : index
    %c0_0 = arith.constant 0 : index
    %0 = vector.load %arg1[%c0, %c0_0] : memref<8x16xf32, #tpu.memory_space<vmem>>, vector<8x16xf32>
    %c0_1 = arith.constant 0 : index
    %c0_2 = arith.constant 0 : index
    %1 = vector.load %arg4[%c0_1, %c0_2] : memref<16x512xf32, #tpu.memory_space<vmem>>, vector<16x512xf32>
    %cst = arith.constant dense<0.000000e+00> : vector<8x512xf32>
    %2 = tpu.matmul %0, %1, %cst {dimension_numbers = #tpu.dot_dimension_numbers<[1], [0], [0], [1], [0, 0, 1, 1], [], []>} : vector<8x16xf32>, vector<16x512xf32>, vector<8x512xf32> -> vector<8x512xf32>
    %c0_3 = arith.constant 0 : index
    %c0_4 = arith.constant 0 : index
    %3 = vector.load %arg2[%c0_3, %c0_4] : memref<8x32xf32, #tpu.memory_space<vmem>>, vector<8x32xf32>
    %c0_5 = arith.constant 0 : index
    %c0_6 = arith.constant 0 : index
    %4 = vector.load %arg5[%c0_5, %c0_6] : memref<32x512xf32, #tpu.memory_space<vmem>>, vector<32x512xf32>
    %cst_7 = arith.constant dense<0.000000e+00> : vector<8x512xf32>
    %5 = tpu.matmul %3, %4, %cst_7 {dimension_numbers = #tpu.dot_dimension_numbers<[1], [0], [0], [1], [0, 0, 1, 1], [], []>} : vector<8x32xf32>, vector<32x512xf32>, vector<8x512xf32> -> vector<8x512xf32>
    %6 = arith.addf %2, %5 : vector<8x512xf32>
    %c0_8 = arith.constant 0 : index
    %c0_9 = arith.constant 0 : index
    %7 = vector.load %arg6[%c0_8, %c0_9] : memref<1x512xf32, #tpu.memory_space<vmem>>, vector<1x512xf32>
    %8 = vector.broadcast %7 : vector<1x512xf32> to vector<8x512xf32>
    %9 = arith.addf %6, %8 : vector<8x512xf32>
    %10 = vector.extract_strided_slice %9 {offsets = [0, 0], sizes = [8, 128], strides = [1, 1]} : vector<8x512xf32> to vector<8x128xf32>
    %11 = vector.extract_strided_slice %9 {offsets = [0, 128], sizes = [8, 128], strides = [1, 1]} : vector<8x512xf32> to vector<8x128xf32>
    %12 = vector.extract_strided_slice %9 {offsets = [0, 256], sizes = [8, 128], strides = [1, 1]} : vector<8x512xf32> to vector<8x128xf32>
    %13 = vector.extract_strided_slice %9 {offsets = [0, 384], sizes = [8, 128], strides = [1, 1]} : vector<8x512xf32> to vector<8x128xf32>
    %14 = math.absf %10 : vector<8x128xf32>
    %cst_10 = arith.constant dense<0.000000e+00> : vector<8xf32>
    %15 = vector.multi_reduction <add>, %14, %cst_10 [1] : vector<8x128xf32> to vector<8xf32>
    %16 = vector.shape_cast %15 : vector<8xf32> to vector<8x1xf32>
    %cst_11 = arith.constant 9.99999996E-13 : f32
    %17 = vector.broadcast %cst_11 : f32 to vector<8x1xf32>
    %18 = arith.maximumf %16, %17 : vector<8x1xf32>
    %19 = tpu.reciprocal %18 : vector<8x1xf32> -> vector<8x1xf32>
    %20 = vector.broadcast %19 : vector<8x1xf32> to vector<8x128xf32>
    %21 = arith.mulf %10, %20 : vector<8x128xf32>
    %22 = arith.negf %21 : vector<8x128xf32>
    %23 = math.exp %22 : vector<8x128xf32>
    %cst_12 = arith.constant 1.000000e+00 : f32
    %24 = vector.broadcast %cst_12 : f32 to vector<8x128xf32>
    %25 = arith.addf %24, %23 : vector<8x128xf32>
    %26 = arith.divf %24, %25 : vector<8x128xf32>
    %27 = math.absf %11 : vector<8x128xf32>
    %cst_13 = arith.constant dense<0.000000e+00> : vector<8xf32>
    %28 = vector.multi_reduction <add>, %27, %cst_13 [1] : vector<8x128xf32> to vector<8xf32>
    %29 = vector.shape_cast %28 : vector<8xf32> to vector<8x1xf32>
    %cst_14 = arith.constant 9.99999996E-13 : f32
    %30 = vector.broadcast %cst_14 : f32 to vector<8x1xf32>
    %31 = arith.maximumf %29, %30 : vector<8x1xf32>
    %32 = tpu.reciprocal %31 : vector<8x1xf32> -> vector<8x1xf32>
    %33 = vector.broadcast %32 : vector<8x1xf32> to vector<8x128xf32>
    %34 = arith.mulf %11, %33 : vector<8x128xf32>
    %35 = arith.negf %34 : vector<8x128xf32>
    %36 = math.exp %35 : vector<8x128xf32>
    %cst_15 = arith.constant 1.000000e+00 : f32
    %37 = vector.broadcast %cst_15 : f32 to vector<8x128xf32>
    %38 = arith.addf %37, %36 : vector<8x128xf32>
    %39 = arith.divf %37, %38 : vector<8x128xf32>
    %40 = math.absf %13 : vector<8x128xf32>
    %cst_16 = arith.constant dense<0.000000e+00> : vector<8xf32>
    %41 = vector.multi_reduction <add>, %40, %cst_16 [1] : vector<8x128xf32> to vector<8xf32>
    %42 = vector.shape_cast %41 : vector<8xf32> to vector<8x1xf32>
    %cst_17 = arith.constant 9.99999996E-13 : f32
    %43 = vector.broadcast %cst_17 : f32 to vector<8x1xf32>
    %44 = arith.maximumf %42, %43 : vector<8x1xf32>
    %45 = tpu.reciprocal %44 : vector<8x1xf32> -> vector<8x1xf32>
    %46 = vector.broadcast %45 : vector<8x1xf32> to vector<8x128xf32>
    %47 = arith.mulf %13, %46 : vector<8x128xf32>
    %48 = arith.negf %47 : vector<8x128xf32>
    %49 = math.exp %48 : vector<8x128xf32>
    %cst_18 = arith.constant 1.000000e+00 : f32
    %50 = vector.broadcast %cst_18 : f32 to vector<8x128xf32>
    %51 = arith.addf %50, %49 : vector<8x128xf32>
    %52 = arith.divf %50, %51 : vector<8x128xf32>
    %c0_19 = arith.constant 0 : index
    %c0_20 = arith.constant 0 : index
    %53 = vector.load %arg3[%c0_19, %c0_20] : memref<8x128xf32, #tpu.memory_space<vmem>>, vector<8x128xf32>
    %54 = arith.mulf %39, %53 : vector<8x128xf32>
    %55 = arith.mulf %26, %12 : vector<8x128xf32>
    %56 = arith.addf %54, %55 : vector<8x128xf32>
    %cst_21 = arith.constant 0.000000e+00 : f32
    %57 = vector.broadcast %cst_21 : f32 to vector<8x128xf32>
    %58 = arith.maximumf %56, %57 : vector<8x128xf32>
    %59 = arith.mulf %52, %58 : vector<8x128xf32>
    %c0_22 = arith.constant 0 : index
    %c0_23 = arith.constant 0 : index
    %60 = vector.load %arg8[%c0_22, %c0_23] : memref<8x128xf32, #tpu.memory_space<vmem>>, vector<8x128xf32>
    tpu.vector_store %arg8[%c0_22, %c0_23], %56 {strides = array<i32>} : memref<8x128xf32, #tpu.memory_space<vmem>>, vector<8x128xf32>,
    %c0_24 = arith.constant 0 : index
    %c0_25 = arith.constant 0 : index
    %61 = vector.load %arg7[%c0_24, %c0_25] : memref<8x128xf32, #tpu.memory_space<vmem>>, vector<8x128xf32>
    tpu.vector_store %arg7[%c0_24, %c0_25], %59 {strides = array<i32>} : memref<8x128xf32, #tpu.memory_space<vmem>>, vector<8x128xf32>,
    return
  }
  func.func @transform_0(%arg0: i32) -> (i32, i32) {
    %c0_i32 = arith.constant 0 : i32
    %c0_i32_0 = arith.constant 0 : i32
    return %arg0, %c0_i32 : i32, i32
  }
  func.func @transform_1(%arg0: i32) -> (i32, i32) {
    %c0_i32 = arith.constant 0 : i32
    %c0_i32_0 = arith.constant 0 : i32
    return %arg0, %c0_i32 : i32, i32
  }
  func.func @transform_2(%arg0: i32) -> (i32, i32) {
    %c0_i32 = arith.constant 0 : i32
    %c0_i32_0 = arith.constant 0 : i32
    return %arg0, %c0_i32 : i32, i32
  }
  func.func @transform_3(%arg0: i32) -> (i32, i32) {
    %c0_i32 = arith.constant 0 : i32
    %c0_i32_0 = arith.constant 0 : i32
    %c0_i32_1 = arith.constant 0 : i32
    return %c0_i32, %c0_i32_0 : i32, i32
  }
  func.func @transform_4(%arg0: i32) -> (i32, i32) {
    %c0_i32 = arith.constant 0 : i32
    %c0_i32_0 = arith.constant 0 : i32
    %c0_i32_1 = arith.constant 0 : i32
    return %c0_i32, %c0_i32_0 : i32, i32
  }
  func.func @transform_5(%arg0: i32) -> (i32, i32) {
    %c0_i32 = arith.constant 0 : i32
    %c0_i32_0 = arith.constant 0 : i32
    %c0_i32_1 = arith.constant 0 : i32
    return %c0_i32, %c0_i32_0 : i32, i32
  }
  func.func @transform_6(%arg0: i32) -> (i32, i32) {
    %c0_i32 = arith.constant 0 : i32
    %c0_i32_0 = arith.constant 0 : i32
    return %arg0, %c0_i32 : i32, i32
  }
  func.func @transform_7(%arg0: i32) -> (i32, i32) {
    %c0_i32 = arith.constant 0 : i32
    %c0_i32_0 = arith.constant 0 : i32
    return %arg0, %c0_i32 : i32, i32
  }
}

</mosaic_0001>

<llo_original>
// kernel: lstm_cell.1
$region0: #{lstm_cell.1}
  #allocation0 [shape = 'u32[]', space=smem, size = 0x4, offset = 0x4, fixed_abs, tag = 'smem constant byte address 0x4 - core index']
  #allocation1 [shape = 'u32[144,128]{1,0:T(1,128)}', space=vmem, size = 0x12000, scoped, tag = 'internal scratch']
  %s0 = inlined_call_operand.vmem [shape: f32[16,16], index: 0, kind: input, shape index: {}]
  %s1 = inlined_call_operand.vmem [shape: f32[16,32], index: 1, kind: input, shape index: {}]
  %s2 = inlined_call_operand.vmem [shape: f32[16,128], index: 2, kind: input, shape index: {}]
  %s3 = inlined_call_operand.hbm [shape: f32[16,512], index: 3, kind: input, shape index: {}]
  %s4 = inlined_call_operand.hbm [shape: f32[32,512], index: 4, kind: input, shape index: {}]
  %s5 = inlined_call_operand.vmem [shape: f32[1,512], index: 5, kind: input, shape index: {}]
  %s6 = inlined_call_operand.vmem [shape: f32[16,128], index: 6, kind: output, shape index: {0}]
  %s7 = inlined_call_operand.vmem [shape: f32[16,128], index: 7, kind: output, shape index: {1}]
  %8 = xla_tuple %s6, %s7
  %s9 = sld [smem:[#allocation0]]
  $region73: #{lstm_cell.1} parent=0
    _
  %s11 = ssub.s32 1, %s9
  %s12 = scalar_select 0, %s11, %s9
  $region1: #{lstm_cell.1} parent=0
    #allocation2 [shape = 'u8[32768]{0}', space=vmem, size = 0x8000, scoped, tag = 'input window, operand 3, single buffered']
    #allocation3 [shape = 's32[2]{0}', space=sflag, size = 0x8, scoped, tag = 'scoped memory for lstm_cell.1']
    #allocation4 [shape = 'u8[65536]{0}', space=vmem, size = 0x10000, scoped, tag = 'input window, operand 4, single buffered']
    #allocation5 [shape = 's32[1]{0}', space=sflag, size = 0x4, scoped, tag = 'scoped memory for lstm_cell.1']
    %13 = vsyncpa [#allocation3], 0
    %14 = vsyncpa [#allocation5], 0
    loop: start=0, step=1, limit=4
    $region2: #{lstm_cell.1} parent=1 // loop_pre_header
      _
    $region3: #{lstm_cell.1} parent=1 // loop_header
      %s16 = sphi 0, %s20
      %p17 = scmp.ge.s32.totalorder %s16, 4
      %s26 = sphi 0, %s28
      %s29 = sphi 0, %s26
      %s30 = sphi 0, %s29
      %s46 = sphi 0, %s30
      %s52 = sphi 0, %s54
      %s55 = sphi 0, %s52
      %s56 = sphi 0, %s55
      %s72 = sphi 0, %s56
      %s78 = sphi 0, %s80
      %s81 = sphi 0, %s78
      %s82 = sphi 0, %s81
      %s98 = sphi 0, %s82
      %s102 = sphi 0, %s102
      %s104 = sphi 0, %s102
      %s105 = sphi 0, %s104
      %s119 = sphi 0, %s105
      %s123 = sphi 0, %s123
      %s125 = sphi 0, %s123
      %s126 = sphi 0, %s125
      %s140 = sphi 0, %s126
      %s144 = sphi 0, %s144
      %s146 = sphi 0, %s144
      %s147 = sphi 0, %s146
      %s161 = sphi 0, %s147
      %s167 = sphi 0, %s169
      %s170 = sphi 0, %s167
      %s171 = sphi 0, %s170
      %s187 = sphi 0, %s171
      %s193 = sphi 0, %s195
      %s196 = sphi 0, %s193
      %s197 = sphi 0, %s196
      %s213 = sphi 0, %s197
    $region4: #{lstm_cell.1} parent=1 // loop_header_branch
      %19 = sbr.rel (%p17) target = $region8
    $region5: #{lstm_cell.1} parent=1 // loop_body
      %s21 = ssub.s32 %s16, 1
      %s22 = ssub.s32 %s16, 2
      %s23 = sadd.s32 %s16, 1
      %s24 = ssub.s32 %s16, %s23
      %p25 = scmp.eq.s32.totalorder %s24, 0
      %s27 = sadd.s32 %s26, 1
      %s28 = scalar_select %p25, %s26, %s27
      %p31 = pneg %p25
      %p32 = scmp.eq.s32.totalorder %s16, 1
      %p33 = por %p31, %p32
      %p34 = scmp.ne.s32.totalorder %s26, %s29
      %p35 = scmp.eq.s32.totalorder %s16, 0
      %p36 = por %p34, %p35
      %p37 = scmp.ne.s32.totalorder %s26, %s29
      %p38 = scmp.eq.s32.totalorder %s21, 1
      %p39 = por %p37, %p38
      %p40 = scmp.ne.s32.totalorder %s29, %s30
      %p41 = scmp.eq.s32.totalorder %s21, 0
      %p42 = por %p40, %p41
      %p43 = scmp.ne.s32.totalorder %s29, %s30
      %p44 = scmp.eq.s32.totalorder %s22, 1
      %p45 = por %p43, %p44
      %p47 = scmp.ne.s32.totalorder %s30, %s46
      %p48 = scmp.eq.s32.totalorder %s22, 0
      %p49 = por %p47, %p48
      %s50 = ssub.s32 %s16, %s23
      %p51 = scmp.eq.s32.totalorder %s50, 0
      %s53 = sadd.s32 %s52, 1
      %s54 = scalar_select %p51, %s52, %s53
      %p57 = pneg %p51
      %p58 = scmp.eq.s32.totalorder %s16, 1
      %p59 = por %p57, %p58
      %p60 = scmp.ne.s32.totalorder %s52, %s55
      %p61 = scmp.eq.s32.totalorder %s16, 0
      %p62 = por %p60, %p61
      %p63 = scmp.ne.s32.totalorder %s52, %s55
      %p64 = scmp.eq.s32.totalorder %s21, 1
      %p65 = por %p63, %p64
      %p66 = scmp.ne.s32.totalorder %s55, %s56
      %p67 = scmp.eq.s32.totalorder %s21, 0
      %p68 = por %p66, %p67
      %p69 = scmp.ne.s32.totalorder %s55, %s56
      %p70 = scmp.eq.s32.totalorder %s22, 1
      %p71 = por %p69, %p70
      %p73 = scmp.ne.s32.totalorder %s56, %s72
      %p74 = scmp.eq.s32.totalorder %s22, 0
      %p75 = por %p73, %p74
      %s76 = ssub.s32 %s16, %s23
      %p77 = scmp.eq.s32.totalorder %s76, 0
      %s79 = sadd.s32 %s78, 1
      %s80 = scalar_select %p77, %s78, %s79
      %p83 = pneg %p77
      %p84 = scmp.eq.s32.totalorder %s16, 1
      %p85 = por %p83, %p84
      %p86 = scmp.ne.s32.totalorder %s78, %s81
      %p87 = scmp.eq.s32.totalorder %s16, 0
      %p88 = por %p86, %p87
      %p89 = scmp.ne.s32.totalorder %s78, %s81
      %p90 = scmp.eq.s32.totalorder %s21, 1
      %p91 = por %p89, %p90
      %p92 = scmp.ne.s32.totalorder %s81, %s82
      %p93 = scmp.eq.s32.totalorder %s21, 0
      %p94 = por %p92, %p93
      %p95 = scmp.ne.s32.totalorder %s81, %s82
      %p96 = scmp.eq.s32.totalorder %s22, 1
      %p97 = por %p95, %p96
      %p99 = scmp.ne.s32.totalorder %s82, %s98
      %p100 = scmp.eq.s32.totalorder %s22, 0
      %p101 = por %p99, %p100
      %s103 = sadd.s32 %s102, 1
      %p106 = scmp.eq.s32.totalorder %s16, 1
      %p107 = scmp.ne.s32.totalorder %s102, %s104
      %p108 = scmp.eq.s32.totalorder %s16, 0
      %p109 = por %p107, %p108
      %p110 = scmp.ne.s32.totalorder %s102, %s104
      %p111 = scmp.eq.s32.totalorder %s21, 1
      %p112 = por %p110, %p111
      %p113 = scmp.ne.s32.totalorder %s104, %s105
      %p114 = scmp.eq.s32.totalorder %s21, 0
      %p115 = por %p113, %p114
      %p116 = scmp.ne.s32.totalorder %s104, %s105
      %p117 = scmp.eq.s32.totalorder %s22, 1
      %p118 = por %p116, %p117
      %p120 = scmp.ne.s32.totalorder %s105, %s119
      %p121 = scmp.eq.s32.totalorder %s22, 0
      %p122 = por %p120, %p121
      %s124 = sadd.s32 %s123, 1
      %p127 = scmp.eq.s32.totalorder %s16, 1
      %p128 = scmp.ne.s32.totalorder %s123, %s125
      %p129 = scmp.eq.s32.totalorder %s16, 0
      %p130 = por %p128, %p129
      %p131 = scmp.ne.s32.totalorder %s123, %s125
      %p132 = scmp.eq.s32.totalorder %s21, 1
      %p133 = por %p131, %p132
      %p134 = scmp.ne.s32.totalorder %s125, %s126
      %p135 = scmp.eq.s32.totalorder %s21, 0
      %p136 = por %p134, %p135
      %p137 = scmp.ne.s32.totalorder %s125, %s126
      %p138 = scmp.eq.s32.totalorder %s22, 1
      %p139 = por %p137, %p138
      %p141 = scmp.ne.s32.totalorder %s126, %s140
      %p142 = scmp.eq.s32.totalorder %s22, 0
      %p143 = por %p141, %p142
      %s145 = sadd.s32 %s144, 1
      %p148 = scmp.eq.s32.totalorder %s16, 1
      %p149 = scmp.ne.s32.totalorder %s144, %s146
      %p150 = scmp.eq.s32.totalorder %s16, 0
      %p151 = por %p149, %p150
      %p152 = scmp.ne.s32.totalorder %s144, %s146
      %p153 = scmp.eq.s32.totalorder %s21, 1
      %p154 = por %p152, %p153
      %p155 = scmp.ne.s32.totalorder %s146, %s147
      %p156 = scmp.eq.s32.totalorder %s21, 0
      %p157 = por %p155, %p156
      %p158 = scmp.ne.s32.totalorder %s146, %s147
      %p159 = scmp.eq.s32.totalorder %s22, 1
      %p160 = por %p158, %p159
      %p162 = scmp.ne.s32.totalorder %s147, %s161
      %p163 = scmp.eq.s32.totalorder %s22, 0
      %p164 = por %p162, %p163
      %s165 = ssub.s32 %s16, %s23
      %p166 = scmp.eq.s32.totalorder %s165, 0
      %s168 = sadd.s32 %s167, 1
      %s169 = scalar_select %p166, %s167, %s168
      %p172 = pneg %p166
      %p173 = scmp.eq.s32.totalorder %s16, 1
      %p174 = por %p172, %p173
      %p175 = scmp.ne.s32.totalorder %s167, %s170
      %p176 = scmp.eq.s32.totalorder %s16, 0
      %p177 = por %p175, %p176
      %p178 = scmp.ne.s32.totalorder %s167, %s170
      %p179 = scmp.eq.s32.totalorder %s21, 1
      %p180 = por %p178, %p179
      %p181 = scmp.ne.s32.totalorder %s170, %s171
      %p182 = scmp.eq.s32.totalorder %s21, 0
      %p183 = por %p181, %p182
      %p184 = scmp.ne.s32.totalorder %s170, %s171
      %p185 = scmp.eq.s32.totalorder %s22, 1
      %p186 = por %p184, %p185
      %p188 = scmp.ne.s32.totalorder %s171, %s187
      %p189 = scmp.eq.s32.totalorder %s22, 0
      %p190 = por %p188, %p189
      %s191 = ssub.s32 %s16, %s23
      %p192 = scmp.eq.s32.totalorder %s191, 0
      %s194 = sadd.s32 %s193, 1
      %s195 = scalar_select %p192, %s193, %s194
      %p198 = pneg %p192
      %p199 = scmp.eq.s32.totalorder %s16, 1
      %p200 = por %p198, %p199
      %p201 = scmp.ne.s32.totalorder %s193, %s196
      %p202 = scmp.eq.s32.totalorder %s16, 0
      %p203 = por %p201, %p202
      %p204 = scmp.ne.s32.totalorder %s193, %s196
      %p205 = scmp.eq.s32.totalorder %s21, 1
      %p206 = por %p204, %p205
      %p207 = scmp.ne.s32.totalorder %s196, %s197
      %p208 = scmp.eq.s32.totalorder %s21, 0
      %p209 = por %p207, %p208
      %p210 = scmp.ne.s32.totalorder %s196, %s197
      %p211 = scmp.eq.s32.totalorder %s22, 1
      %p212 = por %p210, %p211
      %p214 = scmp.ne.s32.totalorder %s197, %s213
      %p215 = scmp.eq.s32.totalorder %s22, 0
      %p216 = por %p214, %p215
      %p217 = scmp.le.s32.totalorder 1, %s16
      %p218 = scmp.lt.s32.totalorder %s16, 3
      %p219 = pnand %p217, %p218
      %p220 = pneg %p219
      // Predicated region
      $region9: #{lstm_cell.1} parent=5 // pred_check
        _
      $region10: #{lstm_cell.1} parent=5 // pred_check_branch
        %222 = sbr.rel (%p219) target = $region12
      $region11: #{lstm_cell.1} parent=5 // pred_region
        %s223 = ssub.s32 %s16, 1
        // Predicated region
        $region13: #{lstm_cell.1} parent=11 // pred_check
          %p224 = pneg %p115
        $region14: #{lstm_cell.1} parent=11 // pred_check_branch
          %226 = sbr.rel (%p224) target = $region16
        $region15: #{lstm_cell.1} parent=11 // pred_region
          %s228 = ssub.s32 1024, 1024
          %229 = vsyncadd [#allocation3], %s228
          %s230 = sshll.u32 [#allocation2], 4
          %s231 = int_to_ptr.vmem [resolvable:$true] %s230
          %236 = dma.hbm_to_vmem [thread:$0]  %s3, 1024, %s231, [#allocation3], 512, 512, 32
        $region16: #{lstm_cell.1} parent=11 // pred_fallthru
          _
        // Predicated region
        $region17: #{lstm_cell.1} parent=11 // pred_check
          %p237 = pneg %p136
        $region18: #{lstm_cell.1} parent=11 // pred_check_branch
          %239 = sbr.rel (%p237) target = $region20
        $region19: #{lstm_cell.1} parent=11 // pred_region
          %s241 = ssub.s32 2048, 2048
          %242 = vsyncadd [#allocation5], %s241
          %s243 = sshll.u32 [#allocation4], 4
          %s244 = int_to_ptr.vmem [resolvable:$true] %s243
          %249 = dma.hbm_to_vmem [thread:$0]  %s4, 2048, %s244, [#allocation5], 512, 512, 32
        $region20: #{lstm_cell.1} parent=11 // pred_fallthru
          _
        // Predicated region
        $region21: #{lstm_cell.1} parent=11 // pred_check
          %p250 = pneg %p157
        $region22: #{lstm_cell.1} parent=11 // pred_check_branch
          %252 = sbr.rel (%p250) target = $region24
        $region23: #{lstm_cell.1} parent=11 // pred_region
          _
        $region24: #{lstm_cell.1} parent=11 // pred_fallthru
          _
      $region12: #{lstm_cell.1} parent=5 // pred_fallthru
        _
      %p253 = scmp.lt.s32.totalorder %s16, 2
      // Predicated region
      $region25: #{lstm_cell.1} parent=5 // pred_check
        %p254 = pneg %p253
      $region26: #{lstm_cell.1} parent=5 // pred_check_branch
        %256 = sbr.rel (%p254) target = $region28
      $region27: #{lstm_cell.1} parent=5 // pred_region
        // Predicated region
        $region29: #{lstm_cell.1} parent=27 // pred_check
          %p257 = pneg %p36
        $region30: #{lstm_cell.1} parent=27 // pred_check_branch
          %259 = sbr.rel (%p257) target = $region32
        $region31: #{lstm_cell.1} parent=27 // pred_region
          %p260 = scmp.lt.s32.totalorder %s16, 1
          %s261 = scalar_select %p260, %s16, 1
          %s262 = smul.addr %s261, 8
          %s263 = scalar_lea.vmem %s0, %s262
        $region32: #{lstm_cell.1} parent=27 // pred_fallthru
          _
        // Predicated region
        $region33: #{lstm_cell.1} parent=27 // pred_check
          %p264 = pneg %p62
        $region34: #{lstm_cell.1} parent=27 // pred_check_branch
          %266 = sbr.rel (%p264) target = $region36
        $region35: #{lstm_cell.1} parent=27 // pred_region
          %p267 = scmp.lt.s32.totalorder %s16, 1
          %s268 = scalar_select %p267, %s16, 1
          %s269 = smul.addr %s268, 8
          %s270 = scalar_lea.vmem %s1, %s269
        $region36: #{lstm_cell.1} parent=27 // pred_fallthru
          _
        // Predicated region
        $region37: #{lstm_cell.1} parent=27 // pred_check
          %p271 = pneg %p88
        $region38: #{lstm_cell.1} parent=27 // pred_check_branch
          %273 = sbr.rel (%p271) target = $region40
        $region39: #{lstm_cell.1} parent=27 // pred_region
          %p274 = scmp.lt.s32.totalorder %s16, 1
          %s275 = scalar_select %p274, %s16, 1
          %s276 = smul.addr %s275, 8
          %s277 = scalar_lea.vmem %s2, %s276
        $region40: #{lstm_cell.1} parent=27 // pred_fallthru
          _
      $region28: #{lstm_cell.1} parent=5 // pred_fallthru
        _
      %p278 = scmp.le.s32.totalorder 1, %s16
      %p279 = scmp.lt.s32.totalorder %s16, 3
      %p280 = pnand %p278, %p279
      %p281 = pneg %p280
      // Predicated region
      $region41: #{lstm_cell.1} parent=5 // pred_check
        _
      $region42: #{lstm_cell.1} parent=5 // pred_check_branch
        %283 = sbr.rel (%p280) target = $region44
      $region43: #{lstm_cell.1} parent=5 // pred_region
        %s284 = ssub.s32 %s16, 1
        // Predicated region
        $region45: #{lstm_cell.1} parent=43 // pred_check
          %p285 = pneg %p115
        $region46: #{lstm_cell.1} parent=43 // pred_check_branch
          %287 = sbr.rel (%p285) target = $region48
        $region47: #{lstm_cell.1} parent=43 // pred_region
          %288 = dma.done [#allocation3], 1024
        $region48: #{lstm_cell.1} parent=43 // pred_fallthru
          _
        // Predicated region
        $region49: #{lstm_cell.1} parent=43 // pred_check
          %p289 = pneg %p136
        $region50: #{lstm_cell.1} parent=43 // pred_check_branch
          %291 = sbr.rel (%p289) target = $region52
        $region51: #{lstm_cell.1} parent=43 // pred_region
          %292 = dma.done [#allocation5], 2048
        $region52: #{lstm_cell.1} parent=43 // pred_fallthru
          _
        %p293 = scmp.lt.s32.totalorder %s21, 1
        %s294 = scalar_select %p293, %s21, 1
        %s295 = smul.addr %s294, 8
        %s296 = scalar_lea.vmem %s0, %s295
        %p297 = pneg %p42
        %p298 = pneg %p39
        %p299 = scmp.lt.s32.totalorder %s21, 1
        %s300 = scalar_select %p299, %s21, 1
        %s301 = smul.addr %s300, 8
        %s302 = scalar_lea.vmem %s1, %s301
        %p303 = pneg %p68
        %p304 = pneg %p65
        %p305 = scmp.lt.s32.totalorder %s21, 1
        %s306 = scalar_select %p305, %s21, 1
        %s307 = smul.addr %s306, 8
        %s308 = scalar_lea.vmem %s2, %s307
        %p309 = pneg %p94
        %p310 = pneg %p91
        %p311 = pneg %p115
        %p312 = pneg %p112
        %p313 = pneg %p136
        %p314 = pneg %p133
        %p315 = pneg %p157
        %p316 = pneg %p154
        %p317 = pneg %p183
        %p318 = pneg %p180
        %p319 = scmp.lt.s32.totalorder %s21, 1
        %s320 = scalar_select %p319, %s21, 1
        %s321 = smul.addr %s320, 8
        %s322 = scalar_lea.vmem %s6, %s321
        %p323 = pneg %p209
        %p324 = pneg %p206
        %p325 = scmp.lt.s32.totalorder %s21, 1
        %s326 = scalar_select %p325, %s21, 1
        %s327 = smul.addr %s326, 8
        %s328 = scalar_lea.vmem %s7, %s327
        %p329 = scmp.lt.s32.totalorder %s21, 1
        %s330 = scalar_select %p329, %s21, 1
        %s331 = smul.addr %s330, 8
        %s332 = scalar_lea.vmem %s0, %s331
        %p333 = scmp.lt.s32.totalorder %s21, 1
        %s334 = scalar_select %p333, %s21, 1
        %s335 = smul.addr %s334, 8
        %s336 = scalar_lea.vmem %s1, %s335
        %p337 = scmp.lt.s32.totalorder %s21, 1
        %s338 = scalar_select %p337, %s21, 1
        %s339 = smul.addr %s338, 8
        %s340 = scalar_lea.vmem %s2, %s339
        %p341 = scmp.lt.s32.totalorder %s21, 1
        %s342 = scalar_select %p341, %s21, 1
        %s343 = smul.addr %s342, 8
        %s344 = scalar_lea.vmem %s6, %s343
        %p345 = scmp.lt.s32.totalorder %s21, 1
        %s346 = scalar_select %p345, %s21, 1
        %s347 = smul.addr %s346, 8
        %s348 = scalar_lea.vmem %s7, %s347
        %v349 = vld [vmem:[%s332] sm:$0xff]
        %v350 = vld [vmem:[#allocation2] sm:$0xff]
        %v351 = vld [vmem:[#allocation2 + $0x8] sm:$0xff]
        %v352 = vld [vmem:[#allocation2 + $0x10] sm:$0xff]
        %v353 = vld [vmem:[#allocation2 + $0x18] sm:$0xff]
        %v354 = vld [vmem:[#allocation2 + $0x20] sm:$0xff]
        %v355 = vld [vmem:[#allocation2 + $0x28] sm:$0xff]
        %v356 = vld [vmem:[#allocation2 + $0x30] sm:$0xff]
        %v357 = vld [vmem:[#allocation2 + $0x38] sm:$0xff]
        %v358 = vld [vmem:[%s336] sm:$0xff]
        %v359 = vld [vmem:[#allocation4] sm:$0xff]
        %v360 = vld [vmem:[#allocation4 + $0x8] sm:$0xff]
        %v361 = vld [vmem:[#allocation4 + $0x10] sm:$0xff]
        %v362 = vld [vmem:[#allocation4 + $0x18] sm:$0xff]
        %v363 = vld [vmem:[#allocation4 + $0x20] sm:$0xff]
        %v364 = vld [vmem:[#allocation4 + $0x28] sm:$0xff]
        %v365 = vld [vmem:[#allocation4 + $0x30] sm:$0xff]
        %v366 = vld [vmem:[#allocation4 + $0x38] sm:$0xff]
        %v367 = vld [vmem:[#allocation4 + $0x40] sm:$0xff]
        %v368 = vld [vmem:[#allocation4 + $0x48] sm:$0xff]
        %v369 = vld [vmem:[#allocation4 + $0x50] sm:$0xff]
        %v370 = vld [vmem:[#allocation4 + $0x58] sm:$0xff]
        %v371 = vld [vmem:[#allocation4 + $0x60] sm:$0xff]
        %v372 = vld [vmem:[#allocation4 + $0x68] sm:$0xff]
        %v373 = vld [vmem:[#allocation4 + $0x70] sm:$0xff]
        %v374 = vld [vmem:[#allocation4 + $0x78] sm:$0xff]
        %vm375 = vcmask 261120
        %v377 = vsel %vm375, %v358, 0
        %379 = vmatprep.subr.mxu0 %v360
        %380 = vmatpush1.msra.mxu0 %v359
        %381 = vmatprep.subr.mxu0 %v364
        %382 = vmatpush1.msra.mxu0 %v363
        %383 = vmatprep.subr.mxu0 %v368
        %384 = vmatpush1.msra.mxu0 %v367
        %385 = vmatprep.subr.mxu0 %v372
        %386 = vmatpush1.msra.mxu0 %v371
        %387 = vmatprep.subr.mxu0 0.0
        %388 = vmatpush1.msra.mxu0 0.0
        %389 = vmatprep.subr.mxu0 0.0
        %390 = vmatpush1.msra.mxu0 0.0
        %391 = vmatprep.subr.mxu0 0.0
        %392 = vmatpush1.msra.mxu0 0.0
        %393 = vmatprep.subr.mxu0 0.0
        %394 = vmatpush1.msra.mxu0 0.0
        %395 = vmatprep.subr.mxu0 0.0
        %396 = vmatpush1.msra.mxu0 0.0
        %397 = vmatprep.subr.mxu0 0.0
        %398 = vmatpush1.msra.mxu0 0.0
        %399 = vmatprep.subr.mxu0 0.0
        %400 = vmatpush1.msra.mxu0 0.0
        %401 = vmatprep.subr.mxu0 0.0
        %402 = vmatpush1.msra.mxu0 0.0
        %403 = vmatprep.subr.mxu0 0.0
        %404 = vmatpush1.msra.mxu0 0.0
        %405 = vmatprep.subr.mxu0 0.0
        %406 = vmatpush1.msra.mxu0 0.0
        %407 = vmatprep.subr.mxu0 0.0
        %408 = vmatpush1.msra.mxu0 0.0
        %409 = vmatprep.subr.mxu0 0.0
        %410 = vmatpush1.msra.mxu0 0.0
        %411 = vmatprep.subr.mxu0 0.0
        %412 = vmatpush1.msra.mxu0 0.0
        %413 = vmatprep.subr.mxu0 0.0
        %414 = vmatpush1.msra.mxu0 0.0
        %415 = vmatprep.subr.mxu0 0.0
        %416 = vmatpush1.msra.mxu0 0.0
        %417 = vmatprep.subr.mxu0 0.0
        %418 = vmatpush1.msra.mxu0 0.0
        %419 = vmatprep.subr.mxu0 0.0
        %420 = vmatpush1.msra.mxu0 0.0
        %421 = vmatprep.subr.mxu0 0.0
        %422 = vmatpush1.msra.mxu0 0.0
        %423 = vmatprep.subr.mxu0 0.0
        %424 = vmatpush1.msra.mxu0 0.0
        %425 = vmatprep.subr.mxu0 0.0
        %426 = vmatpush1.msra.mxu0 0.0
        %427 = vmatprep.subr.mxu0 0.0
        %428 = vmatpush1.msra.mxu0 0.0
        %429 = vmatprep.subr.mxu0 0.0
        %430 = vmatpush1.msra.mxu0 0.0
        %431 = vmatprep.subr.mxu0 0.0
        %432 = vmatpush1.msra.mxu0 0.0
        %433 = vmatprep.subr.mxu0 0.0
        %434 = vmatpush1.msra.mxu0 0.0
        %435 = vmatprep.subr.mxu0 0.0
        %436 = vmatpush1.msra.mxu0 0.0
        %437 = vmatprep.subr.mxu0 0.0
        %438 = vmatpush1.msra.mxu0 0.0
        %439 = vmatprep.subr.mxu0 0.0
        %440 = vmatpush1.msra.mxu0 0.0
        %441 = vmatprep.subr.mxu0 0.0
        %442 = vmatpush1.msra.mxu0 0.0
        %443 = vmatprep.mubr.f32.mxu0 0.0
        %444 = vmatmul.mubr.f32.gmra.mrb[0].mxu0 %v377
        %v445 = vpop.f32.mrb[0].mxu0
        %v446 = vadd.f32 0.0, %v445
        %v447 = vpop.f32.mrb[0].mxu0
        %v448 = vadd.f32 0.0, %v447
        %449 = vdwg.mxu0
        %450 = vmatprep.subr.mxu0 %v362
        %451 = vmatpush1.msra.mxu0 %v361
        %452 = vmatprep.subr.mxu0 %v366
        %453 = vmatpush1.msra.mxu0 %v365
        %454 = vmatprep.subr.mxu0 %v370
        %455 = vmatpush1.msra.mxu0 %v369
        %456 = vmatprep.subr.mxu0 %v374
        %457 = vmatpush1.msra.mxu0 %v373
        %458 = vmatprep.subr.mxu0 0.0
        %459 = vmatpush1.msra.mxu0 0.0
        %460 = vmatprep.subr.mxu0 0.0
        %461 = vmatpush1.msra.mxu0 0.0
        %462 = vmatprep.subr.mxu0 0.0
        %463 = vmatpush1.msra.mxu0 0.0
        %464 = vmatprep.subr.mxu0 0.0
        %465 = vmatpush1.msra.mxu0 0.0
        %466 = vmatprep.subr.mxu0 0.0
        %467 = vmatpush1.msra.mxu0 0.0
        %468 = vmatprep.subr.mxu0 0.0
        %469 = vmatpush1.msra.mxu0 0.0
        %470 = vmatprep.subr.mxu0 0.0
        %471 = vmatpush1.msra.mxu0 0.0
        %472 = vmatprep.subr.mxu0 0.0
        %473 = vmatpush1.msra.mxu0 0.0
        %474 = vmatprep.subr.mxu0 0.0
        %475 = vmatpush1.msra.mxu0 0.0
        %476 = vmatprep.subr.mxu0 0.0
        %477 = vmatpush1.msra.mxu0 0.0
        %478 = vmatprep.subr.mxu0 0.0
        %479 = vmatpush1.msra.mxu0 0.0
        %480 = vmatprep.subr.mxu0 0.0
        %481 = vmatpush1.msra.mxu0 0.0
        %482 = vmatprep.subr.mxu0 0.0
        %483 = vmatpush1.msra.mxu0 0.0
        %484 = vmatprep.subr.mxu0 0.0
        %485 = vmatpush1.msra.mxu0 0.0
        %486 = vmatprep.subr.mxu0 0.0
        %487 = vmatpush1.msra.mxu0 0.0
        %488 = vmatprep.subr.mxu0 0.0
        %489 = vmatpush1.msra.mxu0 0.0
        %490 = vmatprep.subr.mxu0 0.0
        %491 = vmatpush1.msra.mxu0 0.0
        %492 = vmatprep.subr.mxu0 0.0
        %493 = vmatpush1.msra.mxu0 0.0
        %494 = vmatprep.subr.mxu0 0.0
        %495 = vmatpush1.msra.mxu0 0.0
        %496 = vmatprep.subr.mxu0 0.0
        %497 = vmatpush1.msra.mxu0 0.0
        %498 = vmatprep.subr.mxu0 0.0
        %499 = vmatpush1.msra.mxu0 0.0
        %500 = vmatprep.subr.mxu0 0.0
        %501 = vmatpush1.msra.mxu0 0.0
        %502 = vmatprep.subr.mxu0 0.0
        %503 = vmatpush1.msra.mxu0 0.0
        %504 = vmatprep.subr.mxu0 0.0
        %505 = vmatpush1.msra.mxu0 0.0
        %506 = vmatprep.subr.mxu0 0.0
        %507 = vmatpush1.msra.mxu0 0.0
        %508 = vmatprep.subr.mxu0 0.0
        %509 = vmatpush1.msra.mxu0 0.0
        %510 = vmatprep.subr.mxu0 0.0
        %511 = vmatpush1.msra.mxu0 0.0
        %512 = vmatprep.subr.mxu0 0.0
        %513 = vmatpush1.msra.mxu0 0.0
        %514 = vmatprep.mubr.f32.mxu0 0.0
        %515 = vmatmul.mubr.f32.gmra.mrb[0].mxu0 %v377
        %v516 = vpop.f32.mrb[0].mxu0
        %v517 = vadd.f32 0.0, %v516
        %v518 = vpop.f32.mrb[0].mxu0
        %v519 = vadd.f32 0.0, %v518
        %520 = vdwg.mxu0
        %vm521 = vcmask 130048
        %v523 = vsel %vm521, %v349, 0
        %525 = vmatprep.subr.mxu0 %v351
        %526 = vmatpush1.msra.mxu0 %v350
        %527 = vmatprep.subr.mxu0 %v355
        %528 = vmatpush1.msra.mxu0 %v354
        %529 = vmatprep.subr.mxu0 0.0
        %530 = vmatpush1.msra.mxu0 0.0
        %531 = vmatprep.subr.mxu0 0.0
        %532 = vmatpush1.msra.mxu0 0.0
        %533 = vmatprep.subr.mxu0 0.0
        %534 = vmatpush1.msra.mxu0 0.0
        %535 = vmatprep.subr.mxu0 0.0
        %536 = vmatpush1.msra.mxu0 0.0
        %537 = vmatprep.subr.mxu0 0.0
        %538 = vmatpush1.msra.mxu0 0.0
        %539 = vmatprep.subr.mxu0 0.0
        %540 = vmatpush1.msra.mxu0 0.0
        %541 = vmatprep.subr.mxu0 0.0
        %542 = vmatpush1.msra.mxu0 0.0
        %543 = vmatprep.subr.mxu0 0.0
        %544 = vmatpush1.msra.mxu0 0.0
        %545 = vmatprep.subr.mxu0 0.0
        %546 = vmatpush1.msra.mxu0 0.0
        %547 = vmatprep.subr.mxu0 0.0
        %548 = vmatpush1.msra.mxu0 0.0
        %549 = vmatprep.subr.mxu0 0.0
        %550 = vmatpush1.msra.mxu0 0.0
        %551 = vmatprep.subr.mxu0 0.0
        %552 = vmatpush1.msra.mxu0 0.0
        %553 = vmatprep.subr.mxu0 0.0
        %554 = vmatpush1.msra.mxu0 0.0
        %555 = vmatprep.subr.mxu0 0.0
        %556 = vmatpush1.msra.mxu0 0.0
        %557 = vmatprep.subr.mxu0 0.0
        %558 = vmatpush1.msra.mxu0 0.0
        %559 = vmatprep.subr.mxu0 0.0
        %560 = vmatpush1.msra.mxu0 0.0
        %561 = vmatprep.subr.mxu0 0.0
        %562 = vmatpush1.msra.mxu0 0.0
        %563 = vmatprep.subr.mxu0 0.0
        %564 = vmatpush1.msra.mxu0 0.0
        %565 = vmatprep.subr.mxu0 0.0
        %566 = vmatpush1.msra.mxu0 0.0
        %567 = vmatprep.subr.mxu0 0.0
        %568 = vmatpush1.msra.mxu0 0.0
        %569 = vmatprep.subr.mxu0 0.0
        %570 = vmatpush1.msra.mxu0 0.0
        %571 = vmatprep.subr.mxu0 0.0
        %572 = vmatpush1.msra.mxu0 0.0
        %573 = vmatprep.subr.mxu0 0.0
        %574 = vmatpush1.msra.mxu0 0.0
        %575 = vmatprep.subr.mxu0 0.0
        %576 = vmatpush1.msra.mxu0 0.0
        %577 = vmatprep.subr.mxu0 0.0
        %578 = vmatpush1.msra.mxu0 0.0
        %579 = vmatprep.subr.mxu0 0.0
        %580 = vmatpush1.msra.mxu0 0.0
        %581 = vmatprep.subr.mxu0 0.0
        %582 = vmatpush1.msra.mxu0 0.0
        %583 = vmatprep.subr.mxu0 0.0
        %584 = vmatpush1.msra.mxu0 0.0
        %585 = vmatprep.subr.mxu0 0.0
        %586 = vmatpush1.msra.mxu0 0.0
        %587 = vmatprep.subr.mxu0 0.0
        %588 = vmatpush1.msra.mxu0 0.0
        %589 = vmatprep.mubr.f32.mxu0 0.0
        %590 = vmatmul.mubr.f32.gmra.mrb[0].mxu0 %v523
        %v591 = vpop.f32.mrb[0].mxu0
        %v592 = vadd.f32 %v446, %v591
        %v593 = vpop.f32.mrb[0].mxu0
        %v594 = vadd.f32 %v448, %v593
        %595 = vdwg.mxu0
        %596 = vmatprep.subr.mxu0 %v353
        %597 = vmatpush1.msra.mxu0 %v352
        %598 = vmatprep.subr.mxu0 %v357
        %599 = vmatpush1.msra.mxu0 %v356
        %600 = vmatprep.subr.mxu0 0.0
        %601 = vmatpush1.msra.mxu0 0.0
        %602 = vmatprep.subr.mxu0 0.0
        %603 = vmatpush1.msra.mxu0 0.0
        %604 = vmatprep.subr.mxu0 0.0
        %605 = vmatpush1.msra.mxu0 0.0
        %606 = vmatprep.subr.mxu0 0.0
        %607 = vmatpush1.msra.mxu0 0.0
        %608 = vmatprep.subr.mxu0 0.0
        %609 = vmatpush1.msra.mxu0 0.0
        %610 = vmatprep.subr.mxu0 0.0
        %611 = vmatpush1.msra.mxu0 0.0
        %612 = vmatprep.subr.mxu0 0.0
        %613 = vmatpush1.msra.mxu0 0.0
        %614 = vmatprep.subr.mxu0 0.0
        %615 = vmatpush1.msra.mxu0 0.0
        %616 = vmatprep.subr.mxu0 0.0
        %617 = vmatpush1.msra.mxu0 0.0
        %618 = vmatprep.subr.mxu0 0.0
        %619 = vmatpush1.msra.mxu0 0.0
        %620 = vmatprep.subr.mxu0 0.0
        %621 = vmatpush1.msra.mxu0 0.0
        %622 = vmatprep.subr.mxu0 0.0
        %623 = vmatpush1.msra.mxu0 0.0
        %624 = vmatprep.subr.mxu0 0.0
        %625 = vmatpush1.msra.mxu0 0.0
        %626 = vmatprep.subr.mxu0 0.0
        %627 = vmatpush1.msra.mxu0 0.0
        %628 = vmatprep.subr.mxu0 0.0
        %629 = vmatpush1.msra.mxu0 0.0
        %630 = vmatprep.subr.mxu0 0.0
        %631 = vmatpush1.msra.mxu0 0.0
        %632 = vmatprep.subr.mxu0 0.0
        %633 = vmatpush1.msra.mxu0 0.0
        %634 = vmatprep.subr.mxu0 0.0
        %635 = vmatpush1.msra.mxu0 0.0
        %636 = vmatprep.subr.mxu0 0.0
        %637 = vmatpush1.msra.mxu0 0.0
        %638 = vmatprep.subr.mxu0 0.0
        %639 = vmatpush1.msra.mxu0 0.0
        %640 = vmatprep.subr.mxu0 0.0
        %641 = vmatpush1.msra.mxu0 0.0
        %642 = vmatprep.subr.mxu0 0.0
        %643 = vmatpush1.msra.mxu0 0.0
        %644 = vmatprep.subr.mxu0 0.0
        %645 = vmatpush1.msra.mxu0 0.0
        %646 = vmatprep.subr.mxu0 0.0
        %647 = vmatpush1.msra.mxu0 0.0
        %648 = vmatprep.subr.mxu0 0.0
        %649 = vmatpush1.msra.mxu0 0.0
        %650 = vmatprep.subr.mxu0 0.0
        %651 = vmatpush1.msra.mxu0 0.0
        %652 = vmatprep.subr.mxu0 0.0
        %653 = vmatpush1.msra.mxu0 0.0
        %654 = vmatprep.subr.mxu0 0.0
        %655 = vmatpush1.msra.mxu0 0.0
        %656 = vmatprep.subr.mxu0 0.0
        %657 = vmatpush1.msra.mxu0 0.0
        %658 = vmatprep.subr.mxu0 0.0
        %659 = vmatpush1.msra.mxu0 0.0
        %660 = vmatprep.mubr.f32.mxu0 0.0
        %661 = vmatmul.mubr.f32.gmra.mrb[0].mxu0 %v523
        %v662 = vpop.f32.mrb[0].mxu0
        %v663 = vadd.f32 %v517, %v662
        %v664 = vpop.f32.mrb[0].mxu0
        %v665 = vadd.f32 %v519, %v664
        %666 = vdwg.mxu0
        %v667 = vld [vmem:[%s5] sm:$0xf]
        %v669 = vlaneseq
        %v670 = vshrl.u32 %v669, 7
        %v671 = vsub.s32 0, %v670
        %v672 = vrot.slane %v667, %v671
        %v673 = vlaneseq
        %v674 = vshrl.u32 %v673, 7
        %v675 = vsub.s32 1, %v674
        %v676 = vrot.slane %v667, %v675
        %v677 = vlaneseq
        %v678 = vshrl.u32 %v677, 7
        %v679 = vsub.s32 2, %v678
        %v680 = vrot.slane %v667, %v679
        %v681 = vlaneseq
        %v682 = vshrl.u32 %v681, 7
        %v683 = vsub.s32 3, %v682
        %v684 = vrot.slane %v667, %v683
        %v689 = vadd.f32 %v592, %v672
        %v690 = vadd.f32 %v594, %v676
        %v691 = vadd.f32 %v663, %v680
        %v692 = vadd.f32 %v665, %v684
        %v693 = vand.u32 2147483647, %v689
        %694 = vadd.xlane.f32.xlu0 %v693
        %v695 = vpop.xlane.xlu0 %694
        %v696 = vmax.f32 %v695, 1e-12
        %v697 = vrcp.pop %v696
        %v698 = vmul.f32 %v689, %v697
        %v699 = vxor.u32 %v698, 2147483648
        %v700 = vmul.f32 %v699, 1.442695
        %v701 = vpow.pop %v700
        %v702 = vadd.f32 %v701, 1.0
        %v703 = vrcp.pop %v702
        %v704 = vmul.f32 1.0, %v703
        %v705 = vand.u32 2147483647, %v690
        %706 = vadd.xlane.f32.xlu0 %v705
        %v707 = vpop.xlane.xlu0 %706
        %v708 = vmax.f32 %v707, 1e-12
        %v709 = vrcp.pop %v708
        %v710 = vmul.f32 %v690, %v709
        %v711 = vxor.u32 %v710, 2147483648
        %v712 = vmul.f32 %v711, 1.442695
        %v713 = vpow.pop %v712
        %v714 = vadd.f32 %v713, 1.0
        %v715 = vrcp.pop %v714
        %v716 = vmul.f32 1.0, %v715
        %v717 = vand.u32 2147483647, %v692
        %718 = vadd.xlane.f32.xlu0 %v717
        %v719 = vpop.xlane.xlu0 %718
        %v720 = vmax.f32 %v719, 1e-12
        %v721 = vrcp.pop %v720
        %v722 = vmul.f32 %v692, %v721
        %v723 = vxor.u32 %v722, 2147483648
        %v724 = vmul.f32 %v723, 1.442695
        %v725 = vpow.pop %v724
        %v726 = vadd.f32 %v725, 1.0
        %v727 = vrcp.pop %v726
        %v728 = vmul.f32 1.0, %v727
        %v729 = vld [vmem:[%s340] sm:$0xff]
        %v730 = vmul.f32 %v716, %v729
        %v731 = vmul.f32 %v704, %v691
        %v732 = vadd.f32 %v730, %v731
        %v733 = vmax.f32 %v732, 0.0
        %v734 = vmul.f32 %v728, %v733
        %735 = vst [vmem:[%s348] sm:$0xff] %v732
        %736 = vst [vmem:[%s344] sm:$0xff] %v734
        %p737 = scmp.lt.s32.totalorder %s21, 1
        %s738 = scalar_select %p737, %s21, 1
        %s739 = smul.addr %s738, 8
        %s740 = scalar_lea.vmem %s6, %s739
        %p741 = scmp.lt.s32.totalorder %s21, 1
        %s742 = scalar_select %p741, %s21, 1
        %s743 = smul.addr %s742, 8
        %s744 = scalar_lea.vmem %s7, %s743
        // Predicated region
        $region53: #{lstm_cell.1} parent=43 // pred_check
          %p745 = pneg %p180
        $region54: #{lstm_cell.1} parent=43 // pred_check_branch
          %747 = sbr.rel (%p745) target = $region56
        $region55: #{lstm_cell.1} parent=43 // pred_region
          _
        $region56: #{lstm_cell.1} parent=43 // pred_fallthru
          _
        // Predicated region
        $region57: #{lstm_cell.1} parent=43 // pred_check
          %p748 = pneg %p206
        $region58: #{lstm_cell.1} parent=43 // pred_check_branch
          %750 = sbr.rel (%p748) target = $region60
        $region59: #{lstm_cell.1} parent=43 // pred_region
          _
        $region60: #{lstm_cell.1} parent=43 // pred_fallthru
          _
      $region44: #{lstm_cell.1} parent=5 // pred_fallthru
        _
      %p751 = scmp.le.s32.totalorder 2, %s16
      // Predicated region
      $region61: #{lstm_cell.1} parent=5 // pred_check
        %p752 = pneg %p751
      $region62: #{lstm_cell.1} parent=5 // pred_check_branch
        %754 = sbr.rel (%p752) target = $region64
      $region63: #{lstm_cell.1} parent=5 // pred_region
        %s755 = ssub.s32 %s16, 2
        // Predicated region
        $region65: #{lstm_cell.1} parent=63 // pred_check
          %p756 = pneg %p186
        $region66: #{lstm_cell.1} parent=63 // pred_check_branch
          %758 = sbr.rel (%p756) target = $region68
        $region67: #{lstm_cell.1} parent=63 // pred_region
          %p759 = scmp.lt.s32.totalorder %s22, 1
          %s760 = scalar_select %p759, %s22, 1
          %s761 = smul.addr %s760, 8
          %s762 = scalar_lea.vmem %s6, %s761
        $region68: #{lstm_cell.1} parent=63 // pred_fallthru
          _
        // Predicated region
        $region69: #{lstm_cell.1} parent=63 // pred_check
          %p763 = pneg %p212
        $region70: #{lstm_cell.1} parent=63 // pred_check_branch
          %765 = sbr.rel (%p763) target = $region72
        $region71: #{lstm_cell.1} parent=63 // pred_region
          %p766 = scmp.lt.s32.totalorder %s22, 1
          %s767 = scalar_select %p766, %s22, 1
          %s768 = smul.addr %s767, 8
          %s769 = scalar_lea.vmem %s7, %s768
        $region72: #{lstm_cell.1} parent=63 // pred_fallthru
          _
      $region64: #{lstm_cell.1} parent=5 // pred_fallthru
        _
    $region6: #{lstm_cell.1} parent=1 // loop_footer
      %s20 = sadd.s32 1, %s16
    $region7: #{lstm_cell.1} parent=1 // loop_footer_branch
      %15 = sbr.rel target = $region3
    $region8: #{lstm_cell.1} parent=1 // loop_exit
      _
    %770 = vsyncpa [#allocation3], 1
    %s771 = scalar_lea.sflag [#allocation3], 1
    %772 = vsyncpa %s771, 1
    %773 = vsyncpa [#allocation5], 1

</llo_original>
